<compile_context>
chip_gen: v7x
topology: tpu7x:2x2x1
jax: 0.10.0
libtpu: 0.0.40
codegen_flags: <defaults>
</compile_context>

<pallas_src>
import functools

import jax
import jax.numpy as jnp
from jax.experimental import pallas as pl
from jax.experimental.pallas import tpu as pltpu


# ------------------------------ helpers ------------------------------------

def _vmem_limit(working_set_bytes):
    # Generous headroom over the estimated per-step working set, floored at the
    # 32 MiB default and capped below v7x's 64 MiB physical VMEM.
    return int(min(max(2 * working_set_bytes + (4 << 20), 32 << 20), 64 << 20))


def _choose_row_tile(n_nodes):
    # Single tile for small graphs; otherwise bound the per-tile slabs
    # (~14 B per (TM, N) element: int8 adj x2 buffers + f32 bias/exp temps)
    # to ~24 MiB so the kernel also fits v7x's 64 MiB VMEM with headroom.
    if n_nodes <= 256:
        return n_nodes
    tm = 256
    while tm > 32 and 14 * tm * n_nodes > (24 << 20):
        tm //= 2
    return tm


# -------------------- prep kernel: x -> h = xW+b, a01 = h@A01 ---------------

def _prep_kernel(x_ref, w_ref, b_ref, aw_ref, h_ref, a01_ref, *, apply_elu):
    x = x_ref[...]
    if apply_elu:
        x = jnp.where(x > 0, x, jnp.exp(x) - 1.0)         # F.elu between the layers
    h = jnp.dot(x, w_ref[...], preferred_element_type=jnp.float32) + b_ref[...]
    h_ref[...] = h
    # Merged (neighbor | self) logit projection: one MXU pass -> (TM, 2H).
    a01_ref[...] = jnp.dot(h, aw_ref[...], preferred_element_type=jnp.float32)


def _prep_call(x, W, b, A01, *, apply_elu, tm):
    N, d_in = x.shape
    d_out = W.shape[1]
    two_h = A01.shape[1]
    cost = pl.CostEstimate(
        flops=2 * N * d_in * d_out + 2 * N * d_out * two_h,
        transcendentals=N * d_in if apply_elu else 0,
        bytes_accessed=4 * (N * d_in + d_in * d_out + N * d_out + N * two_h))
    vmem_need = 4 * (2 * tm * d_in + d_in * d_out + 2 * tm * d_out
                     + 2 * tm * two_h + d_out * two_h + d_out)
    kern = functools.partial(_prep_kernel, apply_elu=apply_elu)
    return pl.pallas_call(
        kern,
        grid=(pl.cdiv(N, tm),),
        in_specs=[
            pl.BlockSpec((tm, d_in), lambda i: (i, 0)),      # x rows
            pl.BlockSpec((d_in, d_out), lambda i: (0, 0)),   # W (full)
            pl.BlockSpec((1, d_out), lambda i: (0, 0)),      # b (full)
            pl.BlockSpec((d_out, two_h), lambda i: (0, 0)),  # A01 (full)
        ],
        out_specs=[
            pl.BlockSpec((tm, d_out), lambda i: (i, 0)),     # h rows
            pl.BlockSpec((tm, two_h), lambda i: (i, 0)),     # a01 rows
        ],
        out_shape=[
            jax.ShapeDtypeStruct((N, d_out), jnp.float32),
            jax.ShapeDtypeStruct((N, two_h), jnp.float32),
        ],
        compiler_params=pltpu.CompilerParams(
            dimension_semantics=("parallel",),
            vmem_limit_bytes=_vmem_limit(vmem_need)),
        cost_estimate=cost,
    )(x, W, b, A01)


# ------------- attend kernel: masked softmax + per-head aggregation ---------

def _attend_kernel(anbt_ref, aself_ref, h_ref, adj_ref, out_ref, *,
                   n_heads, f_head, alpha):
    # Additive adjacency bias for this row tile: 0 on edges, -1e30 elsewhere.
    adj_bias = jnp.where(adj_ref[...] != 0, jnp.float32(0.0), jnp.float32(-1e30))
    a_nbt = anbt_ref[...]                       # (H, N)  neighbor logits, node j in lanes
    a_self = aself_ref[...]                     # (TM, H) self logits for this row tile
    h_bf = h_ref[...].astype(jnp.bfloat16)      # (N, Dout) bf16 MXU operand (f32 accum)

    for hd in range(n_heads):
        # e[i, j] = a_nb[j] + a_self[i]   -- pure VPU broadcasts (no MXU, no eye reduce)
        e = a_nbt[hd:hd + 1, :] + a_self[:, hd:hd + 1]          # (TM, N)
        e = jnp.maximum(e, alpha * e) + adj_bias                # leaky_relu + mask
        m = jnp.max(e, axis=-1, keepdims=True)
        p = jnp.exp(e - m)                                      # f32 softmax chain
        s = p * pl.reciprocal(jnp.sum(p, axis=-1, keepdims=True), approx=True)
        out_ref[:, hd * f_head:(hd + 1) * f_head] = jnp.dot(
            s.astype(jnp.bfloat16), h_bf[:, hd * f_head:(hd + 1) * f_head],
            preferred_element_type=jnp.float32)


def _attend_call(a_nbt, a_self, h, adj_i8, *, n_heads, alpha, tm):
    N, d_out = h.shape
    f_head = d_out // n_heads
    cost = pl.CostEstimate(
        flops=2 * N * N * d_out + 6 * n_heads * N * N,
        transcendentals=n_heads * N * N,
        bytes_accessed=N * N + 4 * (2 * N * d_out + 2 * N * n_heads))
    vmem_need = (2 * tm * N                      # adj tile int8, double-buffered
                 + 4 * tm * N * 3                # adj_bias + e/p temps (f32)
                 + 6 * N * d_out                 # h f32 + bf16 copy
                 + 4 * N * n_heads               # a_nbT (full)
                 + 4 * 2 * tm * n_heads          # a_self tile, double-buffered
                 + 4 * 2 * tm * d_out)           # out tile, double-buffered
    kern = functools.partial(_attend_kernel, n_heads=n_heads, f_head=f_head,
                             alpha=alpha)
    return pl.pallas_call(
        kern,
        grid=(pl.cdiv(N, tm),),
        in_specs=[
            pl.BlockSpec((n_heads, N), lambda i: (0, 0)),    # a_nbT (full)
            pl.BlockSpec((tm, n_heads), lambda i: (i, 0)),   # a_self rows
            pl.BlockSpec((N, d_out), lambda i: (0, 0)),      # h (full)
            pl.BlockSpec((tm, N), lambda i: (i, 0)),         # adj rows (int8)
        ],
        out_specs=pl.BlockSpec((tm, d_out), lambda i: (i, 0)),
        out_shape=jax.ShapeDtypeStruct((N, d_out), jnp.float32),
        compiler_params=pltpu.CompilerParams(
            dimension_semantics=("parallel",),
            vmem_limit_bytes=_vmem_limit(vmem_need)),
        cost_estimate=cost,
    )(a_nbt, a_self, h, adj_i8)


# ------------------------------ GAT forward ---------------------------------

def gat_forward(x, adj, params, *, n_heads, alpha):
    N = x.shape[0]
    tm = _choose_row_tile(N)
    adj_i8 = (adj != 0).astype(jnp.int8)        # 4x less DMA / VMEM than f32 adj

    def layer(inp, p, heads, apply_elu):
        h, a01 = _prep_call(inp, p["W"], p["b"], p["A01"],
                            apply_elu=apply_elu, tm=tm)
        # Wrapper-side layout plumbing on tiny (N, H) arrays: neighbor logits
        # transposed once so the in-kernel broadcast is a plain (1, N) add.
        a_nbt = jnp.transpose(a01[:, :heads])   # (H, N)
        a_self = a01[:, heads:]                 # (N, H)
        return _attend_call(a_nbt, a_self, h, adj_i8,
                            n_heads=heads, alpha=alpha, tm=tm)

    z1 = layer(x, params["layer1"], n_heads[0], apply_elu=False)
    return layer(z1, params["layer2"], n_heads[1], apply_elu=True)


# ----------------------- parameter construction (glue) -----------------------

def _xavier_uniform(key, shape, gain=1.414):
    fan_in, fan_out = shape[0], shape[1]
    bound = gain * (6.0 / (fan_in + fan_out)) ** 0.5
    return jax.random.uniform(key, shape, jnp.float32, -bound, bound)


def make_layer_params(key, in_features, out_features, n_heads):
    k_w, k_b, k_a = jax.random.split(key, 3)
    f_head = out_features // n_heads
    # Linear weight stored pre-transposed as (Din, Dout) for x @ W.
    W = _xavier_uniform(k_w, (in_features, out_features))
    b_bound = 1.0 / (in_features ** 0.5)
    b = jax.random.uniform(k_b, (1, out_features), jnp.float32, -b_bound, b_bound)
    # Attention weights: torch shape (2*F, 1), used reshaped as (F, 2).
    a_bound = 1.414 * (6.0 / (2 * f_head + 1)) ** 0.5
    wattn = jax.random.uniform(k_a, (f_head, 2), jnp.float32, -a_bound, a_bound)
    # Block-diagonal projections so that h @ A0 == einsum('nhf,f->nh', h3, wattn[:,0]).
    eye_h = jnp.eye(n_heads, dtype=jnp.float32)
    A0 = jnp.kron(eye_h, wattn[:, 0:1])                  # (Dout, H)  neighbor half
    A1 = jnp.kron(eye_h, wattn[:, 1:2])                  # (Dout, H)  self half
    A01 = jnp.concatenate([A0, A1], axis=1)              # (Dout, 2H) merged
    return {"W": W, "b": b, "A01": A01, "wattn": wattn}


# ----------------------------- pure-JAX reference ----------------------------

def _ref_layer(x, W, b, wattn, adj, n_heads, alpha, apply_elu):
    if apply_elu:
        x = jnp.where(x > 0, x, jnp.exp(x) - 1.0)
    N = x.shape[0]
    h = x @ W + b
    h3 = h.reshape(N, n_heads, -1)
    attn = jnp.einsum('nhf,fi->nhi', h3, wattn)                  # (N, H, 2)
    e = attn[None, :, :, 0] + attn[:, None, :, 1]                # (N, N, H)
    e = jnp.where(e > 0, e, alpha * e)
    e = jnp.where(adj[:, :, None] > 0, e, -jnp.inf)
    m = jnp.max(e, axis=1, keepdims=True)
    p = jnp.exp(e - m)
    s = p / jnp.sum(p, axis=1, keepdims=True)
    return jnp.einsum('ijh,jhf->ihf', s, h3).reshape(N, -1)


def _ref_forward(x, adj, params, n_heads, alpha):
    p1, p2 = params["layer1"], params["layer2"]
    h1 = _ref_layer(x, p1["W"], p1["b"], p1["wattn"], adj, n_heads[0], alpha, False)
    return _ref_layer(h1, p2["W"], p2["b"], p2["wattn"], adj, n_heads[1], alpha, True)


if __name__ == "__main__":
    key = jax.random.PRNGKey(0)
    N, in_features, hidden_features, num_classes = 32, 16, 64, 8
    n_heads = (8, 1)
    alpha = 0.2

    k1, k2, kx, kadj = jax.random.split(key, 4)
    params = {
        "layer1": make_layer_params(k1, in_features, hidden_features, n_heads[0]),
        "layer2": make_layer_params(k2, hidden_features, num_classes, n_heads[1]),
    }

    x = jax.random.normal(kx, (N, in_features), jnp.float32)
    adj = (jax.random.uniform(kadj, (N, N)) < 0.3).astype(jnp.float32)
    adj = jnp.maximum(adj, jnp.eye(N, dtype=jnp.float32))  # self-loops

    out = gat_forward(x, adj, params, n_heads=n_heads, alpha=alpha)
    out = jax.block_until_ready(out)

    ref = jax.block_until_ready(_ref_forward(x, adj, params, n_heads, alpha))
    assert out.shape == (N, num_classes), out.shape
    assert bool(jnp.all(jnp.isfinite(out)))
    assert bool(jnp.allclose(out, ref, rtol=2e-2, atol=2e-2)), \
        float(jnp.max(jnp.abs(out - ref)))

    print("KERNEL_OK")
</pallas_src>

<mosaic_0001>
module attributes {stable_mosaic.version = 11 : i64} {
  func.func @_prep_kernel(%arg0: i32, %arg1: memref<32x16xf32, #tpu.memory_space<vmem>>, %arg2: memref<16x64xf32, #tpu.memory_space<vmem>>, %arg3: memref<1x64xf32, #tpu.memory_space<vmem>>, %arg4: memref<64x16xf32, #tpu.memory_space<vmem>>, %arg5: memref<32x64xf32, #tpu.memory_space<vmem>>, %arg6: memref<32x16xf32, #tpu.memory_space<vmem>>) attributes {dimension_semantics = [#tpu.dimension_semantics<parallel>], iteration_bounds = array<i64: 1>, scalar_prefetch = 0 : i64, scratch_operands = 0 : i64, tpu.core_type = #tpu.core_type<tc>, window_params = [{transform_indices = @transform_0, window_bounds = array<i64: 32, 16>}, {pipeline_mode = #tpu.pipeline_mode<synchronous>, transform_indices = @transform_1, window_bounds = array<i64: 16, 64>}, {pipeline_mode = #tpu.pipeline_mode<synchronous>, transform_indices = @transform_2, window_bounds = array<i64: 1, 64>}, {pipeline_mode = #tpu.pipeline_mode<synchronous>, transform_indices = @transform_3, window_bounds = array<i64: 64, 16>}, {transform_indices = @transform_4, window_bounds = array<i64: 32, 64>}, {transform_indices = @transform_5, window_bounds = array<i64: 32, 16>}]} {
    %c0 = arith.constant 0 : index
    %c0_0 = arith.constant 0 : index
    %0 = vector.load %arg1[%c0, %c0_0] : memref<32x16xf32, #tpu.memory_space<vmem>>, vector<32x16xf32>
    %c0_1 = arith.constant 0 : index
    %c0_2 = arith.constant 0 : index
    %1 = vector.load %arg2[%c0_1, %c0_2] : memref<16x64xf32, #tpu.memory_space<vmem>>, vector<16x64xf32>
    %cst = arith.constant dense<0.000000e+00> : vector<32x64xf32>
    %2 = tpu.matmul %0, %1, %cst {dimension_numbers = #tpu.dot_dimension_numbers<[1], [0], [0], [1], [0, 0, 1, 1], [], []>} : vector<32x16xf32>, vector<16x64xf32>, vector<32x64xf32> -> vector<32x64xf32>
    %c0_3 = arith.constant 0 : index
    %c0_4 = arith.constant 0 : index
    %3 = vector.load %arg3[%c0_3, %c0_4] : memref<1x64xf32, #tpu.memory_space<vmem>>, vector<1x64xf32>
    %4 = vector.broadcast %3 : vector<1x64xf32> to vector<32x64xf32>
    %5 = arith.addf %2, %4 : vector<32x64xf32>
    %c0_5 = arith.constant 0 : index
    %c0_6 = arith.constant 0 : index
    %6 = vector.load %arg5[%c0_5, %c0_6] : memref<32x64xf32, #tpu.memory_space<vmem>>, vector<32x64xf32>
    tpu.vector_store %arg5[%c0_5, %c0_6], %5 {strides = array<i32>} : memref<32x64xf32, #tpu.memory_space<vmem>>, vector<32x64xf32>,
    %c0_7 = arith.constant 0 : index
    %c0_8 = arith.constant 0 : index
    %7 = vector.load %arg4[%c0_7, %c0_8] : memref<64x16xf32, #tpu.memory_space<vmem>>, vector<64x16xf32>
    %cst_9 = arith.constant dense<0.000000e+00> : vector<32x16xf32>
    %8 = tpu.matmul %5, %7, %cst_9 {dimension_numbers = #tpu.dot_dimension_numbers<[1], [0], [0], [1], [0, 0, 1, 1], [], []>} : vector<32x64xf32>, vector<64x16xf32>, vector<32x16xf32> -> vector<32x16xf32>
    %c0_10 = arith.constant 0 : index
    %c0_11 = arith.constant 0 : index
    %9 = vector.load %arg6[%c0_10, %c0_11] : memref<32x16xf32, #tpu.memory_space<vmem>>, vector<32x16xf32>
    tpu.vector_store %arg6[%c0_10, %c0_11], %8 {strides = array<i32>} : memref<32x16xf32, #tpu.memory_space<vmem>>, vector<32x16xf32>,
    return
  }
  func.func @transform_0(%arg0: i32) -> (i32, i32) {
    %c0_i32 = arith.constant 0 : i32
    %c0_i32_0 = arith.constant 0 : i32
    return %arg0, %c0_i32 : i32, i32
  }
  func.func @transform_1(%arg0: i32) -> (i32, i32) {
    %c0_i32 = arith.constant 0 : i32
    %c0_i32_0 = arith.constant 0 : i32
    %c0_i32_1 = arith.constant 0 : i32
    return %c0_i32, %c0_i32_0 : i32, i32
  }
  func.func @transform_2(%arg0: i32) -> (i32, i32) {
    %c0_i32 = arith.constant 0 : i32
    %c0_i32_0 = arith.constant 0 : i32
    %c0_i32_1 = arith.constant 0 : i32
    return %c0_i32, %c0_i32_0 : i32, i32
  }
  func.func @transform_3(%arg0: i32) -> (i32, i32) {
    %c0_i32 = arith.constant 0 : i32
    %c0_i32_0 = arith.constant 0 : i32
    %c0_i32_1 = arith.constant 0 : i32
    return %c0_i32, %c0_i32_0 : i32, i32
  }
  func.func @transform_4(%arg0: i32) -> (i32, i32) {
    %c0_i32 = arith.constant 0 : i32
    %c0_i32_0 = arith.constant 0 : i32
    return %arg0, %c0_i32 : i32, i32
  }
  func.func @transform_5(%arg0: i32) -> (i32, i32) {
    %c0_i32 = arith.constant 0 : i32
    %c0_i32_0 = arith.constant 0 : i32
    return %arg0, %c0_i32 : i32, i32
  }
}

</mosaic_0001>

<llo_original>
// kernel: tpu_custom_call.1
$region0: #{tpu_custom_call.1}
  #allocation0 [shape = 'u32[]', space=smem, size = 0x4, offset = 0x4, fixed_abs, tag = 'smem constant byte address 0x4 - core index']
  #allocation1 [shape = 'u32[144,128]{1,0:T(1,128)}', space=vmem, size = 0x12000, scoped, tag = 'internal scratch']
  %s0 = inlined_call_operand.vmem [shape: f32[32,16], index: 0, kind: input, shape index: {}]
  %s1 = inlined_call_operand.vmem [shape: f32[16,64], index: 1, kind: input, shape index: {}]
  %s2 = inlined_call_operand.vmem [shape: f32[1,64], index: 2, kind: input, shape index: {}]
  %s3 = inlined_call_operand.vmem [shape: f32[64,16], index: 3, kind: input, shape index: {}]
  %s4 = inlined_call_operand.hbm [shape: f32[32,64], index: 4, kind: output, shape index: {0}]
  %s5 = inlined_call_operand.vmem [shape: f32[32,16], index: 5, kind: output, shape index: {1}]
  %6 = xla_tuple %s4, %s5
  %s7 = sld [smem:[#allocation0]]
  $region34: #{tpu_custom_call.1} parent=0
    _
  %s9 = ssub.s32 1, %s7
  %s10 = scalar_select 0, %s9, %s7
  $region1: #{tpu_custom_call.1} parent=0
    #allocation2 [shape = 'u8[16384]{0}', space=vmem, size = 0x4000, scoped, tag = 'output window, operand 0, single buffered']
    #allocation3 [shape = 's32[1]{0}', space=sflag, size = 0x4, scoped, tag = 'scoped memory for tpu_custom_call.1']
    %11 = vsyncpa [#allocation3], 0
    // Predicated region
    $region2: #{tpu_custom_call.1} parent=1 // pred_check
      _
    $region3: #{tpu_custom_call.1} parent=1 // pred_check_branch
      %13 = sbr.rel (0) target = $region5
    $region4: #{tpu_custom_call.1} parent=1 // pred_region
      _
    $region5: #{tpu_custom_call.1} parent=1 // pred_fallthru
      _
    // Predicated region
    $region6: #{tpu_custom_call.1} parent=1 // pred_check
      _
    $region7: #{tpu_custom_call.1} parent=1 // pred_check_branch
      %15 = sbr.rel (0) target = $region9
    $region8: #{tpu_custom_call.1} parent=1 // pred_region
      _
    $region9: #{tpu_custom_call.1} parent=1 // pred_fallthru
      _
    // Predicated region
    $region10: #{tpu_custom_call.1} parent=1 // pred_check
      _
    $region11: #{tpu_custom_call.1} parent=1 // pred_check_branch
      %17 = sbr.rel (0) target = $region13
    $region12: #{tpu_custom_call.1} parent=1 // pred_region
      _
    $region13: #{tpu_custom_call.1} parent=1 // pred_fallthru
      _
    // Predicated region
    $region14: #{tpu_custom_call.1} parent=1 // pred_check
      _
    $region15: #{tpu_custom_call.1} parent=1 // pred_check_branch
      %19 = sbr.rel (0) target = $region17
    $region16: #{tpu_custom_call.1} parent=1 // pred_region
      _
    $region17: #{tpu_custom_call.1} parent=1 // pred_fallthru
      _
    %v20 = vld [vmem:[%s0] sm:$0xff]
    %v21 = vld [vmem:[%s0 + $0x8] sm:$0xff]
    %v22 = vld [vmem:[%s0 + $0x10] sm:$0xff]
    %v23 = vld [vmem:[%s0 + $0x18] sm:$0xff]
    %v24 = vld [vmem:[%s1] sm:$0xff]
    %v25 = vld [vmem:[%s1 + $0x8] sm:$0xff]
    %v26 = vld [vmem:[%s2] sm:$0x1]
    %v28 = vlaneseq
    %v29 = vshrl.u32 %v28, 7
    %v30 = vsub.s32 0, %v29
    %v31 = vrot.slane %v26, %v30
    %vm33 = vcmask 130048
    %v35 = vsel %vm33, %v20, 0
    %v38 = vsel %vm33, %v21, 0
    %v41 = vsel %vm33, %v22, 0
    %v44 = vsel %vm33, %v23, 0
    %46 = vmatprep.subr.mxu0 0.0
    %47 = vmatpush1.msra.mxu0 %v24
    %48 = vmatprep.subr.mxu0 0.0
    %49 = vmatpush1.msra.mxu0 %v25
    %50 = vmatprep.subr.mxu0 0.0
    %51 = vmatpush1.msra.mxu0 0.0
    %52 = vmatprep.subr.mxu0 0.0
    %53 = vmatpush1.msra.mxu0 0.0
    %54 = vmatprep.subr.mxu0 0.0
    %55 = vmatpush1.msra.mxu0 0.0
    %56 = vmatprep.subr.mxu0 0.0
    %57 = vmatpush1.msra.mxu0 0.0
    %58 = vmatprep.subr.mxu0 0.0
    %59 = vmatpush1.msra.mxu0 0.0
    %60 = vmatprep.subr.mxu0 0.0
    %61 = vmatpush1.msra.mxu0 0.0
    %62 = vmatprep.subr.mxu0 0.0
    %63 = vmatpush1.msra.mxu0 0.0
    %64 = vmatprep.subr.mxu0 0.0
    %65 = vmatpush1.msra.mxu0 0.0
    %66 = vmatprep.subr.mxu0 0.0
    %67 = vmatpush1.msra.mxu0 0.0
    %68 = vmatprep.subr.mxu0 0.0
    %69 = vmatpush1.msra.mxu0 0.0
    %70 = vmatprep.subr.mxu0 0.0
    %71 = vmatpush1.msra.mxu0 0.0
    %72 = vmatprep.subr.mxu0 0.0
    %73 = vmatpush1.msra.mxu0 0.0
    %74 = vmatprep.subr.mxu0 0.0
    %75 = vmatpush1.msra.mxu0 0.0
    %76 = vmatprep.subr.mxu0 0.0
    %77 = vmatpush1.msra.mxu0 0.0
    %78 = vmatprep.subr.mxu0 0.0
    %79 = vmatpush1.msra.mxu0 0.0
    %80 = vmatprep.subr.mxu0 0.0
    %81 = vmatpush1.msra.mxu0 0.0
    %82 = vmatprep.subr.mxu0 0.0
    %83 = vmatpush1.msra.mxu0 0.0
    %84 = vmatprep.subr.mxu0 0.0
    %85 = vmatpush1.msra.mxu0 0.0
    %86 = vmatprep.subr.mxu0 0.0
    %87 = vmatpush1.msra.mxu0 0.0
    %88 = vmatprep.subr.mxu0 0.0
    %89 = vmatpush1.msra.mxu0 0.0
    %90 = vmatprep.subr.mxu0 0.0
    %91 = vmatpush1.msra.mxu0 0.0
    %92 = vmatprep.subr.mxu0 0.0
    %93 = vmatpush1.msra.mxu0 0.0
    %94 = vmatprep.subr.mxu0 0.0
    %95 = vmatpush1.msra.mxu0 0.0
    %96 = vmatprep.subr.mxu0 0.0
    %97 = vmatpush1.msra.mxu0 0.0
    %98 = vmatprep.subr.mxu0 0.0
    %99 = vmatpush1.msra.mxu0 0.0
    %100 = vmatprep.subr.mxu0 0.0
    %101 = vmatpush1.msra.mxu0 0.0
    %102 = vmatprep.subr.mxu0 0.0
    %103 = vmatpush1.msra.mxu0 0.0
    %104 = vmatprep.subr.mxu0 0.0
    %105 = vmatpush1.msra.mxu0 0.0
    %106 = vmatprep.subr.mxu0 0.0
    %107 = vmatpush1.msra.mxu0 0.0
    %108 = vmatprep.subr.mxu0 0.0
    %109 = vmatpush1.msra.mxu0 0.0
    %110 = vmatprep.mubr.f32.mxu0 0.0
    %111 = vmatmul.mubr.f32.gmra.mrb[0].mxu0 %v35
    %v112 = vpop.f32.mrb[0].mxu0
    %v113 = vadd.f32 %v31, %v112
    %v114 = vpop.f32.mrb[0].mxu0
    %115 = vmatprep.mubr.f32.mxu0 0.0
    %116 = vmatmul.mubr.f32.gmra.mrb[0].mxu0 %v38
    %v117 = vpop.f32.mrb[0].mxu0
    %v118 = vadd.f32 %v31, %v117
    %v119 = vpop.f32.mrb[0].mxu0
    %120 = vmatprep.mubr.f32.mxu0 0.0
    %121 = vmatmul.mubr.f32.gmra.mrb[0].mxu0 %v41
    %v122 = vpop.f32.mrb[0].mxu0
    %v123 = vadd.f32 %v31, %v122
    %v124 = vpop.f32.mrb[0].mxu0
    %125 = vmatprep.mubr.f32.mxu0 0.0
    %126 = vmatmul.mubr.f32.gmra.mrb[0].mxu0 %v44
    %v127 = vpop.f32.mrb[0].mxu0
    %v128 = vadd.f32 %v31, %v127
    %v129 = vpop.f32.mrb[0].mxu0
    %130 = vdwg.mxu0
    %vm131 = vcmask 523264
    %132 = vst.msk [vmem:[#allocation2] sm:$0xff] %vm131, %v113
    %133 = vst.msk [vmem:[#allocation2 + $0x8] sm:$0xff] %vm131, %v118
    %134 = vst.msk [vmem:[#allocation2 + $0x10] sm:$0xff] %vm131, %v123
    %135 = vst.msk [vmem:[#allocation2 + $0x18] sm:$0xff] %vm131, %v128
    %v136 = vld [vmem:[%s3] sm:$0xff]
    %v137 = vld [vmem:[%s3 + $0x8] sm:$0xff]
    %v138 = vld [vmem:[%s3 + $0x10] sm:$0xff]
    %v139 = vld [vmem:[%s3 + $0x18] sm:$0xff]
    %v140 = vld [vmem:[%s3 + $0x20] sm:$0xff]
    %v141 = vld [vmem:[%s3 + $0x28] sm:$0xff]
    %v142 = vld [vmem:[%s3 + $0x30] sm:$0xff]
    %v143 = vld [vmem:[%s3 + $0x38] sm:$0xff]
    %v145 = vsel %vm131, %v113, 0
    %v148 = vsel %vm131, %v118, 0
    %v151 = vsel %vm131, %v123, 0
    %v154 = vsel %vm131, %v128, 0
    %156 = vmatprep.subr.mxu0 0.0
    %157 = vmatpush1.msra.mxu0 %v136
    %158 = vmatprep.subr.mxu0 0.0
    %159 = vmatpush1.msra.mxu0 %v137
    %160 = vmatprep.subr.mxu0 0.0
    %161 = vmatpush1.msra.mxu0 %v138
    %162 = vmatprep.subr.mxu0 0.0
    %163 = vmatpush1.msra.mxu0 %v139
    %164 = vmatprep.subr.mxu0 0.0
    %165 = vmatpush1.msra.mxu0 %v140
    %166 = vmatprep.subr.mxu0 0.0
    %167 = vmatpush1.msra.mxu0 %v141
    %168 = vmatprep.subr.mxu0 0.0
    %169 = vmatpush1.msra.mxu0 %v142
    %170 = vmatprep.subr.mxu0 0.0
    %171 = vmatpush1.msra.mxu0 %v143
    %172 = vmatprep.subr.mxu0 0.0
    %173 = vmatpush1.msra.mxu0 0.0
    %174 = vmatprep.subr.mxu0 0.0
    %175 = vmatpush1.msra.mxu0 0.0
    %176 = vmatprep.subr.mxu0 0.0
    %177 = vmatpush1.msra.mxu0 0.0
    %178 = vmatprep.subr.mxu0 0.0
    %179 = vmatpush1.msra.mxu0 0.0
    %180 = vmatprep.subr.mxu0 0.0
    %181 = vmatpush1.msra.mxu0 0.0
    %182 = vmatprep.subr.mxu0 0.0
    %183 = vmatpush1.msra.mxu0 0.0
    %184 = vmatprep.subr.mxu0 0.0
    %185 = vmatpush1.msra.mxu0 0.0
    %186 = vmatprep.subr.mxu0 0.0
    %187 = vmatpush1.msra.mxu0 0.0
    %188 = vmatprep.subr.mxu0 0.0
    %189 = vmatpush1.msra.mxu0 0.0
    %190 = vmatprep.subr.mxu0 0.0
    %191 = vmatpush1.msra.mxu0 0.0
    %192 = vmatprep.subr.mxu0 0.0
    %193 = vmatpush1.msra.mxu0 0.0
    %194 = vmatprep.subr.mxu0 0.0
    %195 = vmatpush1.msra.mxu0 0.0
    %196 = vmatprep.subr.mxu0 0.0
    %197 = vmatpush1.msra.mxu0 0.0
    %198 = vmatprep.subr.mxu0 0.0
    %199 = vmatpush1.msra.mxu0 0.0
    %200 = vmatprep.subr.mxu0 0.0
    %201 = vmatpush1.msra.mxu0 0.0
    %202 = vmatprep.subr.mxu0 0.0
    %203 = vmatpush1.msra.mxu0 0.0
    %204 = vmatprep.subr.mxu0 0.0
    %205 = vmatpush1.msra.mxu0 0.0
    %206 = vmatprep.subr.mxu0 0.0
    %207 = vmatpush1.msra.mxu0 0.0
    %208 = vmatprep.subr.mxu0 0.0
    %209 = vmatpush1.msra.mxu0 0.0
    %210 = vmatprep.subr.mxu0 0.0
    %211 = vmatpush1.msra.mxu0 0.0
    %212 = vmatprep.subr.mxu0 0.0
    %213 = vmatpush1.msra.mxu0 0.0
    %214 = vmatprep.subr.mxu0 0.0
    %215 = vmatpush1.msra.mxu0 0.0
    %216 = vmatprep.subr.mxu0 0.0
    %217 = vmatpush1.msra.mxu0 0.0
    %218 = vmatprep.subr.mxu0 0.0
    %219 = vmatpush1.msra.mxu0 0.0
    %220 = vmatprep.mubr.f32.mxu0 0.0
    %221 = vmatmul.mubr.f32.gmra.mrb[0].mxu0 %v145
    %v222 = vpop.f32.mrb[0].mxu0
    %v223 = vadd.f32 0.0, %v222
    %v224 = vpop.f32.mrb[0].mxu0
    %225 = vmatprep.mubr.f32.mxu0 0.0
    %226 = vmatmul.mubr.f32.gmra.mrb[0].mxu0 %v148
    %v227 = vpop.f32.mrb[0].mxu0
    %v228 = vadd.f32 0.0, %v227
    %v229 = vpop.f32.mrb[0].mxu0
    %230 = vmatprep.mubr.f32.mxu0 0.0
    %231 = vmatmul.mubr.f32.gmra.mrb[0].mxu0 %v151
    %v232 = vpop.f32.mrb[0].mxu0
    %v233 = vadd.f32 0.0, %v232
    %v234 = vpop.f32.mrb[0].mxu0
    %235 = vmatprep.mubr.f32.mxu0 0.0
    %236 = vmatmul.mubr.f32.gmra.mrb[0].mxu0 %v154
    %v237 = vpop.f32.mrb[0].mxu0
    %v238 = vadd.f32 0.0, %v237
    %v239 = vpop.f32.mrb[0].mxu0
    %240 = vdwg.mxu0
    %241 = vst.msk [vmem:[%s5] sm:$0xff] %vm33, %v223
    %242 = vst.msk [vmem:[%s5 + $0x8] sm:$0xff] %vm33, %v228
    %243 = vst.msk [vmem:[%s5 + $0x10] sm:$0xff] %vm33, %v233
    %244 = vst.msk [vmem:[%s5 + $0x18] sm:$0xff] %vm33, %v238
    // Predicated region
    $region18: #{tpu_custom_call.1} parent=1 // pred_check
      _
    $region19: #{tpu_custom_call.1} parent=1 // pred_check_branch
      %246 = sbr.rel (0) target = $region21
    $region20: #{tpu_custom_call.1} parent=1 // pred_region
      %s248 = ssub.s32 512, 512
      %249 = vsyncadd [#allocation3], %s248
      %s250 = sshll.u32 [#allocation2], 4
      %s251 = int_to_ptr.vmem [resolvable:$true] %s250
      %256 = dma.vmem_to_hbm [thread:$0]  %s251, 512, %s4, [#allocation3], 128, 128, 8
    $region21: #{tpu_custom_call.1} parent=1 // pred_fallthru
      _
    // Predicated region
    $region22: #{tpu_custom_call.1} parent=1 // pred_check
      _
    $region23: #{tpu_custom_call.1} parent=1 // pred_check_branch
      %258 = sbr.rel (0) target = $region25
    $region24: #{tpu_custom_call.1} parent=1 // pred_region
      _
    $region25: #{tpu_custom_call.1} parent=1 // pred_fallthru
      _
    // Predicated region
    $region26: #{tpu_custom_call.1} parent=1 // pred_check
      _
    $region27: #{tpu_custom_call.1} parent=1 // pred_check_branch
      %260 = sbr.rel (0) target = $region29
    $region28: #{tpu_custom_call.1} parent=1 // pred_region
      %261 = dma.done [#allocation3], 512
    $region29: #{tpu_custom_call.1} parent=1 // pred_fallthru
      _
    // Predicated region
    $region30: #{tpu_custom_call.1} parent=1 // pred_check
      _
    $region31: #{tpu_custom_call.1} parent=1 // pred_check_branch
      %263 = sbr.rel (0) target = $region33
    $region32: #{tpu_custom_call.1} parent=1 // pred_region
      _
    $region33: #{tpu_custom_call.1} parent=1 // pred_fallthru
      _
    %264 = vsyncpa [#allocation3], 1

</llo_original>
